<compile_context>
chip_gen: v6e
topology: v6e:2x2x1
jax: 0.10.0
libtpu: 0.0.40
codegen_flags: <defaults>
</compile_context>

<pallas_src>
import jax
import jax.numpy as jnp
from jax.experimental import pallas as pl
from jax.experimental.pallas import tpu as pltpu


def _convert_kernel(x_ref, o_ref):
    # x_ref: (tn, F) native-layout tile  (F = 6 for body/head, 21 for face)
    # o_ref: (tn, 5) rows of [x1, y1, x2, y2, score]
    x = x_ref[...].astype(jnp.float32)

    xy = x[:, 0:2]            # (tn, 2) : cx, cy
    half_wh = 0.5 * x[:, 2:4]  # (tn, 2) : 0.5*w, 0.5*h

    # boxes @ convert_matrix with
    #   [[1,0,1,0],[0,1,0,1],[-0.5,0,0.5,0],[0,-0.5,0,0.5]]
    # folded exactly into its per-anchor linear combinations:
    o_ref[:, 0:2] = xy - half_wh              # x1, y1
    o_ref[:, 2:4] = xy + half_wh              # x2, y2
    # scores *= conf (reference slices a single class column x[:, :, 5:6]):
    o_ref[:, 4:5] = x[:, 4:5] * x[:, 5:6]     # max_score (single class)
    # category_id is always 0 for a single class and nmsbox == boxes; both are
    # only consumed by the randomized ORT_NMS placeholder, so neither is emitted.


def convert_pallas(x_bnf, tile_n=2048):
    """x_bnf: (B, N, F) float32/bf16 -> (B, N, 5) float32 [x1,y1,x2,y2,score]."""
    B, N, F = x_bnf.shape
    tn = min(int(tile_n), N)
    if tn != N:
        # second-minor block dim must be a multiple of 8 unless it equals N
        tn = max(8, (tn // 8) * 8)
    grid = (B, pl.cdiv(N, tn))  # boundary blocks are padded/clipped by Pallas
    return pl.pallas_call(
        _convert_kernel,
        out_shape=jax.ShapeDtypeStruct((B, N, 5), jnp.float32),
        grid=grid,
        in_specs=[pl.BlockSpec((None, tn, F), lambda b, n: (b, n, 0))],
        out_specs=pl.BlockSpec((None, tn, 5), lambda b, n: (b, n, 0)),
        compiler_params=pltpu.CompilerParams(
            dimension_semantics=("parallel", "parallel")),
    )(x_bnf)


def _fake_ort_nms(key, batch, num_anchors, num_det=8):
    # TODO(synk): ORT_NMS.forward in the reference is a *random* placeholder
    # (not a real NMS); reproduce its (batch_idx, 0, anchor_idx) output format
    # deterministically from a fixed PRNG key instead.
    batches = jnp.sort(jax.random.randint(key, (num_det,), 0, batch))
    idxs = jnp.arange(100, 100 + num_det) % num_anchors
    return batches.astype(jnp.int32), idxs.astype(jnp.int32)


class ONNX_ORT:
    """JAX/Pallas port of the ONNX_ORT module forward pass."""

    def __init__(self, max_obj=100, iou_thres=0.45, score_thres=0.25,
                 max_wh=640, tile_n=2048):
        self.max_obj = max_obj
        self.iou_threshold = iou_thres
        self.score_threshold = score_thres
        self.max_wh = max_wh
        self.tile_n = tile_n

    def _convert(self, x_bnf, key, lmks_ls=None):
        # x_bnf: (B, N, F), reference layout — consumed directly (no transposes)
        B, N, F = x_bnf.shape
        out = convert_pallas(x_bnf, self.tile_n)         # (B, N, 5) hot path

        X, Y = _fake_ort_nms(key, B, N)                  # selected (batch, anchor)
        sel = out[X, Y]                                  # (num_det, 5)
        selected_boxes = sel[:, 0:4]
        selected_scores = sel[:, 4:5]
        # single-class head: argmax over the class dim is always 0
        selected_categories = jnp.zeros_like(selected_scores)
        selected_lmks = None
        if lmks_ls is not None:
            assert len(lmks_ls) % 3 == 0
            selected_lmks = x_bnf[X, Y][:, jnp.asarray(lmks_ls)]
        return X, Y, selected_boxes, selected_categories, selected_scores, selected_lmks

    def __call__(self, x, key):
        kb, kh, kf = jax.random.split(key, 3)

        body = x['IDetectBody'][0]
        bX, _, bboxes, bcats, bscores, _ = self._convert(body, kb)
        onnx_body = jnp.concatenate(
            [bX[:, None].astype(jnp.float32), bboxes, bcats, bscores], axis=1)

        head = x['IDetectHead'][0]
        hX, _, hboxes, hcats, hscores, _ = self._convert(head, kh)
        onnx_head = jnp.concatenate(
            [hX[:, None].astype(jnp.float32), hboxes, hcats, hscores], axis=1)

        face = x['IKeypoint'][0]
        get_kpt = [6, 7, 8, 9, 10, 11, 12, 13, 14, 15, 16, 17, 18, 19, 20]
        fX, _, fboxes, fcats, fscores, lmks = self._convert(face, kf, get_kpt)
        onnx_face = jnp.concatenate(
            [fX[:, None].astype(jnp.float32), fboxes, fcats, fscores, lmks], axis=1)

        return onnx_head, onnx_face, onnx_body


if __name__ == "__main__":
    key = jax.random.PRNGKey(0)
    kb, kh, kf, knms = jax.random.split(key, 4)

    # Small, non-128-multiple anchor count to exercise the cdiv / padded-tail path.
    B, N = 2, 300
    # body/head: 6 features (cx, cy, w, h, conf, class_score)
    body = jax.random.normal(kb, (B, N, 6), dtype=jnp.float32)
    head = jax.random.normal(kh, (B, N, 6), dtype=jnp.float32)
    # face: 6 + 15 keypoint values (indices 6..20)
    face = jax.random.normal(kf, (B, N, 21), dtype=jnp.float32)

    x = {
        'IDetectBody': (body,),
        'IDetectHead': (head,),
        'IKeypoint': (face,),
    }

    # tile_n=128 here only to force a multi-step grid with a clipped tail at
    # this small N; production (N ~ 25200) should keep the 2048 default.
    model = ONNX_ORT(max_obj=100, iou_thres=0.45, score_thres=0.25,
                     max_wh=640, tile_n=128)
    onnx_head, onnx_face, onnx_body = model(x, key=knms)
    jax.block_until_ready((onnx_head, onnx_face, onnx_body))

    assert onnx_head.shape == (8, 7)
    assert onnx_body.shape == (8, 7)
    assert onnx_face.shape == (8, 22)

    # Reference check of the box math on the selected rows of the body tensor.
    Xb, Yb = _fake_ort_nms(kb if False else jax.random.split(knms, 3)[0], B, N)
    sel_in = body[Xb, Yb]
    ref_boxes = jnp.stack(
        [sel_in[:, 0] - 0.5 * sel_in[:, 2], sel_in[:, 1] - 0.5 * sel_in[:, 3],
         sel_in[:, 0] + 0.5 * sel_in[:, 2], sel_in[:, 1] + 0.5 * sel_in[:, 3]], axis=1)
    assert jnp.allclose(onnx_body[:, 1:5], ref_boxes, atol=1e-5)
    assert jnp.allclose(onnx_body[:, 6], sel_in[:, 4] * sel_in[:, 5], atol=1e-5)

    print("KERNEL_OK")
</pallas_src>

<mosaic_0001>
module attributes {stable_mosaic.version = 11 : i64} {
  func.func @_convert_kernel(%arg0: i32, %arg1: i32, %arg2: memref<1x128x6xf32, #tpu.memory_space<vmem>>, %arg3: memref<1x128x5xf32, #tpu.memory_space<vmem>>) attributes {dimension_semantics = [#tpu.dimension_semantics<parallel>, #tpu.dimension_semantics<parallel>], iteration_bounds = array<i64: 2, 3>, scalar_prefetch = 0 : i64, scratch_operands = 0 : i64, tpu.core_type = #tpu.core_type<tc>, window_params = [{transform_indices = @transform_0, window_bounds = array<i64: 1, 128, 6>}, {transform_indices = @transform_1, window_bounds = array<i64: 1, 128, 5>}]} {
    %c0 = arith.constant 0 : index
    %c0_0 = arith.constant 0 : index
    %c0_1 = arith.constant 0 : index
    %0 = vector.load %arg2[%c0, %c0_0, %c0_1] : memref<1x128x6xf32, #tpu.memory_space<vmem>>, vector<1x128x6xf32>
    %1 = vector.shape_cast %0 : vector<1x128x6xf32> to vector<128x6xf32>
    %2 = vector.extract_strided_slice %1 {offsets = [0, 0], sizes = [128, 2], strides = [1, 1]} : vector<128x6xf32> to vector<128x2xf32>
    %3 = vector.extract_strided_slice %1 {offsets = [0, 2], sizes = [128, 2], strides = [1, 1]} : vector<128x6xf32> to vector<128x2xf32>
    %cst = arith.constant 5.000000e-01 : f32
    %4 = vector.broadcast %cst : f32 to vector<128x2xf32>
    %5 = arith.mulf %4, %3 : vector<128x2xf32>
    %6 = arith.subf %2, %5 : vector<128x2xf32>
    %c0_2 = arith.constant 0 : index
    %c0_3 = arith.constant 0 : index
    %c0_4 = arith.constant 0 : index
    %7 = vector.load %arg3[%c0_2, %c0_3, %c0_4] : memref<1x128x5xf32, #tpu.memory_space<vmem>>, vector<1x128x2xf32>
    %8 = vector.shape_cast %7 : vector<1x128x2xf32> to vector<128x2xf32>
    %9 = vector.shape_cast %6 : vector<128x2xf32> to vector<1x128x2xf32>
    tpu.vector_store %arg3[%c0_2, %c0_3, %c0_4], %9 {strides = array<i32>} : memref<1x128x5xf32, #tpu.memory_space<vmem>>, vector<1x128x2xf32>,
    %10 = arith.addf %2, %5 : vector<128x2xf32>
    %c0_5 = arith.constant 0 : index
    %c0_6 = arith.constant 0 : index
    %c2 = arith.constant 2 : index
    %11 = vector.load %arg3[%c0_5, %c0_6, %c2] : memref<1x128x5xf32, #tpu.memory_space<vmem>>, vector<1x128x2xf32>
    %12 = vector.shape_cast %11 : vector<1x128x2xf32> to vector<128x2xf32>
    %13 = vector.shape_cast %10 : vector<128x2xf32> to vector<1x128x2xf32>
    tpu.vector_store %arg3[%c0_5, %c0_6, %c2], %13 {strides = array<i32>} : memref<1x128x5xf32, #tpu.memory_space<vmem>>, vector<1x128x2xf32>,
    %14 = vector.extract_strided_slice %1 {offsets = [0, 4], sizes = [128, 1], strides = [1, 1]} : vector<128x6xf32> to vector<128x1xf32>
    %15 = vector.extract_strided_slice %1 {offsets = [0, 5], sizes = [128, 1], strides = [1, 1]} : vector<128x6xf32> to vector<128x1xf32>
    %16 = arith.mulf %14, %15 : vector<128x1xf32>
    %c0_7 = arith.constant 0 : index
    %c0_8 = arith.constant 0 : index
    %c4 = arith.constant 4 : index
    %17 = vector.load %arg3[%c0_7, %c0_8, %c4] : memref<1x128x5xf32, #tpu.memory_space<vmem>>, vector<1x128x1xf32>
    %18 = vector.shape_cast %17 : vector<1x128x1xf32> to vector<128x1xf32>
    %19 = vector.shape_cast %16 : vector<128x1xf32> to vector<1x128x1xf32>
    tpu.vector_store %arg3[%c0_7, %c0_8, %c4], %19 {strides = array<i32>} : memref<1x128x5xf32, #tpu.memory_space<vmem>>, vector<1x128x1xf32>,
    return
  }
  func.func @transform_0(%arg0: i32, %arg1: i32) -> (i32, i32, i32) {
    %c0_i32 = arith.constant 0 : i32
    %c0_i32_0 = arith.constant 0 : i32
    return %arg0, %arg1, %c0_i32 : i32, i32, i32
  }
  func.func @transform_1(%arg0: i32, %arg1: i32) -> (i32, i32, i32) {
    %c0_i32 = arith.constant 0 : i32
    %c0_i32_0 = arith.constant 0 : i32
    return %arg0, %arg1, %c0_i32 : i32, i32, i32
  }
}

</mosaic_0001>

<llo_original>
// kernel: tpu_custom_call.1
$region0: #{tpu_custom_call.1}
  #allocation0 [shape = 'u32[]', space=smem, size = 0x4, offset = 0x4, fixed_abs, tag = 'smem constant byte address 0x4 - core index']
  #allocation1 [shape = 'u32[144,128]{1,0:T(1,128)}', space=vmem, size = 0x12000, scoped, tag = 'internal scratch']
  %s0 = inlined_call_operand.vmem [shape: f32[2,300,6], index: 0, kind: input, shape index: {}]
  %s1 = inlined_call_operand.vmem [shape: f32[2,300,5], index: 1, kind: output, shape index: {}]
  %s2 = sld [smem:[#allocation0]]
  $region85: #{tpu_custom_call.1} parent=0
    _
  %s4 = ssub.s32 1, %s2
  %s5 = scalar_select 0, %s4, %s2
  $region1: #{tpu_custom_call.1} parent=0
    #allocation2 [shape = 'u8[131072]{0}', space=vmem, size = 0x20000, scoped, tag = 'output window, operand 0']
    loop: start=0, step=1, limit=8
    $region2: #{tpu_custom_call.1} parent=1 // loop_pre_header
      _
    $region3: #{tpu_custom_call.1} parent=1 // loop_header
      %s7 = sphi 0, %s11
      %p8 = scmp.ge.s32.totalorder %s7, 8
      %s14 = sphi 0, %s26
      %s15 = sphi 0, %s22
      %s16 = sphi 0, %s14
      %s17 = sphi 0, %s15
      %s18 = sphi 0, %s16
      %s19 = sphi 0, %s17
      %s31 = sphi 0, %s33
      %s34 = sphi 0, %s31
      %s35 = sphi 0, %s34
      %s51 = sphi 0, %s35
      %s59 = sphi 0, %s61
      %s62 = sphi 0, %s59
      %s63 = sphi 0, %s62
      %s79 = sphi 0, %s63
    $region4: #{tpu_custom_call.1} parent=1 // loop_header_branch
      %10 = sbr.rel (%p8) target = $region8
    $region5: #{tpu_custom_call.1} parent=1 // loop_body
      %s12 = ssub.s32 %s7, 1
      %s13 = ssub.s32 %s7, 2
      %s20 = sadd.s32 1, %s15
      %p21 = scmp.ge.s32.totalorder %s20, 3
      %s22 = scalar_select %p21, 0, %s20
      %s23 = sadd.s32 1, %s14
      %s24 = scalar_select %p21, %s23, %s14
      %p25 = scmp.ge.s32.totalorder %s24, 2
      %s26 = scalar_select %p25, 0, %s24
      %s27 = ssub.s32 %s14, %s26
      %s28 = ssub.s32 %s15, %s22
      %s29 = sor.u32 %s27, %s28
      %p30 = scmp.eq.s32.totalorder %s29, 0
      %s32 = sadd.s32 %s31, 1
      %s33 = scalar_select %p30, %s31, %s32
      %p36 = pneg %p30
      %p37 = scmp.eq.s32.totalorder %s7, 5
      %p38 = por %p36, %p37
      %p39 = scmp.ne.s32.totalorder %s31, %s34
      %p40 = scmp.eq.s32.totalorder %s7, 0
      %p41 = por %p39, %p40
      %p42 = scmp.ne.s32.totalorder %s31, %s34
      %p43 = scmp.eq.s32.totalorder %s12, 5
      %p44 = por %p42, %p43
      %p45 = scmp.ne.s32.totalorder %s34, %s35
      %p46 = scmp.eq.s32.totalorder %s12, 0
      %p47 = por %p45, %p46
      %p48 = scmp.ne.s32.totalorder %s34, %s35
      %p49 = scmp.eq.s32.totalorder %s13, 5
      %p50 = por %p48, %p49
      %p52 = scmp.ne.s32.totalorder %s35, %s51
      %p53 = scmp.eq.s32.totalorder %s13, 0
      %p54 = por %p52, %p53
      %s55 = ssub.s32 %s14, %s26
      %s56 = ssub.s32 %s15, %s22
      %s57 = sor.u32 %s55, %s56
      %p58 = scmp.eq.s32.totalorder %s57, 0
      %s60 = sadd.s32 %s59, 1
      %s61 = scalar_select %p58, %s59, %s60
      %p64 = pneg %p58
      %p65 = scmp.eq.s32.totalorder %s7, 5
      %p66 = por %p64, %p65
      %p67 = scmp.ne.s32.totalorder %s59, %s62
      %p68 = scmp.eq.s32.totalorder %s7, 0
      %p69 = por %p67, %p68
      %p70 = scmp.ne.s32.totalorder %s59, %s62
      %p71 = scmp.eq.s32.totalorder %s12, 5
      %p72 = por %p70, %p71
      %p73 = scmp.ne.s32.totalorder %s62, %s63
      %p74 = scmp.eq.s32.totalorder %s12, 0
      %p75 = por %p73, %p74
      %p76 = scmp.ne.s32.totalorder %s62, %s63
      %p77 = scmp.eq.s32.totalorder %s13, 5
      %p78 = por %p76, %p77
      %p80 = scmp.ne.s32.totalorder %s63, %s79
      %p81 = scmp.eq.s32.totalorder %s13, 0
      %p82 = por %p80, %p81
      %p83 = scmp.le.s32.totalorder 1, %s7
      %p84 = scmp.lt.s32.totalorder %s7, 7
      %p85 = pnand %p83, %p84
      %p86 = pneg %p85
      // Predicated region
      $region9: #{tpu_custom_call.1} parent=5 // pred_check
        _
      $region10: #{tpu_custom_call.1} parent=5 // pred_check_branch
        %88 = sbr.rel (%p85) target = $region12
      $region11: #{tpu_custom_call.1} parent=5 // pred_region
        %s89 = ssub.s32 %s7, 1
      $region12: #{tpu_custom_call.1} parent=5 // pred_fallthru
        _
      %p90 = scmp.lt.s32.totalorder %s7, 6
      // Predicated region
      $region13: #{tpu_custom_call.1} parent=5 // pred_check
        %p91 = pneg %p90
      $region14: #{tpu_custom_call.1} parent=5 // pred_check_branch
        %93 = sbr.rel (%p91) target = $region16
      $region15: #{tpu_custom_call.1} parent=5 // pred_region
        // Predicated region
        $region17: #{tpu_custom_call.1} parent=15 // pred_check
          %p94 = pneg %p41
        $region18: #{tpu_custom_call.1} parent=15 // pred_check_branch
          %96 = sbr.rel (%p94) target = $region20
        $region19: #{tpu_custom_call.1} parent=15 // pred_region
          %s97 = smul.u32 16, %s15
          %s98 = ssub.s32 38, %s97
          %p99 = scmp.lt.s32.totalorder %s98, 16
          %s100 = scalar_select %p99, %s98, 16
          %s101 = smul.u32 128, %s100
          %p102 = scmp.lt.s32.totalorder %s14, 1
          %s103 = scalar_select %p102, %s14, 1
          %p104 = scmp.lt.s32.totalorder %s97, 37
          %s105 = scalar_select %p104, %s97, 37
          %s106 = smul.addr %s103, 38
          %s107 = sadd.s32 %s105, %s106
          %s108 = smul.addr %s107, 8
          %s109 = scalar_lea.vmem %s0, %s108
          %s110 = smul.u32 16, %s15
          %s111 = ssub.s32 38, %s110
          %p112 = scmp.lt.s32.totalorder %s111, 16
          %s113 = scalar_select %p112, %s111, 16
          %s114 = smul.u32 128, %s113
        $region20: #{tpu_custom_call.1} parent=15 // pred_fallthru
          _
      $region16: #{tpu_custom_call.1} parent=5 // pred_fallthru
        _
      %p115 = scmp.le.s32.totalorder 1, %s7
      %p116 = scmp.lt.s32.totalorder %s7, 7
      %p117 = pnand %p115, %p116
      %p118 = pneg %p117
      // Predicated region
      $region21: #{tpu_custom_call.1} parent=5 // pred_check
        _
      $region22: #{tpu_custom_call.1} parent=5 // pred_check_branch
        %120 = sbr.rel (%p117) target = $region24
      $region23: #{tpu_custom_call.1} parent=5 // pred_region
        %s121 = ssub.s32 %s7, 1
        %s122 = smul.u32 16, %s17
        %s123 = ssub.s32 38, %s122
        %p124 = scmp.lt.s32.totalorder %s123, 16
        %s125 = scalar_select %p124, %s123, 16
        %s126 = smul.u32 128, %s125
        %p127 = scmp.lt.s32.totalorder %s16, 1
        %s128 = scalar_select %p127, %s16, 1
        %p129 = scmp.lt.s32.totalorder %s122, 37
        %s130 = scalar_select %p129, %s122, 37
        %s131 = smul.addr %s128, 38
        %s132 = sadd.s32 %s130, %s131
        %s133 = smul.addr %s132, 8
        %s134 = scalar_lea.vmem %s0, %s133
        %p135 = pneg %p47
        %p136 = pneg %p44
        %p137 = pneg %p75
        %p138 = pneg %p72
        %s139 = sand.u32 %s62, 1
        %s140 = sand.u32 %s62, 1
        %s141 = smul.addr %s140, 128
        %s142 = scalar_lea.vmem [#allocation2], %s141
        %s143 = smul.u32 16, %s17
        %s144 = ssub.s32 38, %s143
        %p145 = scmp.lt.s32.totalorder %s144, 16
        %s146 = scalar_select %p145, %s144, 16
        %s147 = smul.u32 128, %s146
        %p148 = scmp.lt.s32.totalorder %s16, 1
        %s149 = scalar_select %p148, %s16, 1
        %p150 = scmp.lt.s32.totalorder %s143, 37
        %s151 = scalar_select %p150, %s143, 37
        %s152 = smul.addr %s149, 38
        %s153 = sadd.s32 %s151, %s152
        %s154 = smul.addr %s153, 8
        %s155 = scalar_lea.vmem %s0, %s154
        %s156 = smul.u32 16, %s17
        %s157 = ssub.s32 38, %s156
        %p158 = scmp.lt.s32.totalorder %s157, 16
        %s159 = scalar_select %p158, %s157, 16
        %s160 = smul.u32 128, %s159
        %s161 = smul.u32 16, %s17
        %s162 = ssub.s32 38, %s161
        %p163 = scmp.lt.s32.totalorder %s162, 16
        %s164 = scalar_select %p163, %s162, 16
        %s165 = smul.u32 128, %s164
        %v166 = vld [vmem:[%s155] sm:$0xff]
        %v167 = vld [vmem:[%s155 + $0x8] sm:$0xff]
        %v168 = vld [vmem:[%s155 + $0x10] sm:$0xff]
        %v169 = vld [vmem:[%s155 + $0x18] sm:$0xff]
        %v170 = vld [vmem:[%s155 + $0x20] sm:$0xff]
        %v171 = vld [vmem:[%s155 + $0x28] sm:$0xff]
        %v172 = vld [vmem:[%s155 + $0x30] sm:$0xff]
        %v173 = vld [vmem:[%s155 + $0x38] sm:$0xff]
        %v174 = vld [vmem:[%s155 + $0x40] sm:$0xff]
        %v175 = vld [vmem:[%s155 + $0x48] sm:$0xff]
        %v176 = vld [vmem:[%s155 + $0x50] sm:$0xff]
        %v177 = vld [vmem:[%s155 + $0x58] sm:$0xff]
        %v178 = vld [vmem:[%s155 + $0x60] sm:$0xff]
        %v179 = vld [vmem:[%s155 + $0x68] sm:$0xff]
        %v180 = vld [vmem:[%s155 + $0x70] sm:$0xff]
        %v181 = vld [vmem:[%s155 + $0x78] sm:$0xff]
        %v182 = vmul.f32 %v166, 0.5
        %v183 = vmul.f32 %v167, 0.5
        %v184 = vmul.f32 %v168, 0.5
        %v185 = vmul.f32 %v169, 0.5
        %v186 = vmul.f32 %v170, 0.5
        %v187 = vmul.f32 %v171, 0.5
        %v188 = vmul.f32 %v172, 0.5
        %v189 = vmul.f32 %v173, 0.5
        %v190 = vmul.f32 %v174, 0.5
        %v191 = vmul.f32 %v175, 0.5
        %v192 = vmul.f32 %v176, 0.5
        %v193 = vmul.f32 %v177, 0.5
        %v194 = vmul.f32 %v178, 0.5
        %v195 = vmul.f32 %v179, 0.5
        %v196 = vmul.f32 %v180, 0.5
        %v197 = vmul.f32 %v181, 0.5
        %214 = vrot.lane.b32.xlu0 %v182, 126
        %v215 = vpop.permute.xlu0 %214
        %216 = vrot.lane.b32.xlu0 %v183, 126
        %v217 = vpop.permute.xlu0 %216
        %218 = vrot.lane.b32.xlu0 %v184, 126
        %v219 = vpop.permute.xlu0 %218
        %220 = vrot.lane.b32.xlu0 %v185, 126
        %v221 = vpop.permute.xlu0 %220
        %222 = vrot.lane.b32.xlu0 %v186, 126
        %v223 = vpop.permute.xlu0 %222
        %224 = vrot.lane.b32.xlu0 %v187, 126
        %v225 = vpop.permute.xlu0 %224
        %226 = vrot.lane.b32.xlu0 %v188, 126
        %v227 = vpop.permute.xlu0 %226
        %228 = vrot.lane.b32.xlu0 %v189, 126
        %v229 = vpop.permute.xlu0 %228
        %230 = vrot.lane.b32.xlu0 %v190, 126
        %v231 = vpop.permute.xlu0 %230
        %232 = vrot.lane.b32.xlu0 %v191, 126
        %v233 = vpop.permute.xlu0 %232
        %234 = vrot.lane.b32.xlu0 %v192, 126
        %v235 = vpop.permute.xlu0 %234
        %236 = vrot.lane.b32.xlu0 %v193, 126
        %v237 = vpop.permute.xlu0 %236
        %238 = vrot.lane.b32.xlu0 %v194, 126
        %v239 = vpop.permute.xlu0 %238
        %240 = vrot.lane.b32.xlu0 %v195, 126
        %v241 = vpop.permute.xlu0 %240
        %242 = vrot.lane.b32.xlu0 %v196, 126
        %v243 = vpop.permute.xlu0 %242
        %244 = vrot.lane.b32.xlu0 %v197, 126
        %v245 = vpop.permute.xlu0 %244
        %v262 = vsub.f32 %v166, %v215
        %v263 = vsub.f32 %v167, %v217
        %v264 = vsub.f32 %v168, %v219
        %v265 = vsub.f32 %v169, %v221
        %v266 = vsub.f32 %v170, %v223
        %v267 = vsub.f32 %v171, %v225
        %v268 = vsub.f32 %v172, %v227
        %v269 = vsub.f32 %v173, %v229
        %v270 = vsub.f32 %v174, %v231
        %v271 = vsub.f32 %v175, %v233
        %v272 = vsub.f32 %v176, %v235
        %v273 = vsub.f32 %v177, %v237
        %v274 = vsub.f32 %v178, %v239
        %v275 = vsub.f32 %v179, %v241
        %v276 = vsub.f32 %v180, %v243
        %v277 = vsub.f32 %v181, %v245
        %vm278 = vcmask 15360
        %279 = vst.msk [vmem:[%s142] sm:$0xff] %vm278, %v262
        %280 = vst.msk [vmem:[%s142 + $0x8] sm:$0xff] %vm278, %v263
        %281 = vst.msk [vmem:[%s142 + $0x10] sm:$0xff] %vm278, %v264
        %282 = vst.msk [vmem:[%s142 + $0x18] sm:$0xff] %vm278, %v265
        %283 = vst.msk [vmem:[%s142 + $0x20] sm:$0xff] %vm278, %v266
        %284 = vst.msk [vmem:[%s142 + $0x28] sm:$0xff] %vm278, %v267
        %285 = vst.msk [vmem:[%s142 + $0x30] sm:$0xff] %vm278, %v268
        %286 = vst.msk [vmem:[%s142 + $0x38] sm:$0xff] %vm278, %v269
        %287 = vst.msk [vmem:[%s142 + $0x40] sm:$0xff] %vm278, %v270
        %288 = vst.msk [vmem:[%s142 + $0x48] sm:$0xff] %vm278, %v271
        %289 = vst.msk [vmem:[%s142 + $0x50] sm:$0xff] %vm278, %v272
        %290 = vst.msk [vmem:[%s142 + $0x58] sm:$0xff] %vm278, %v273
        %291 = vst.msk [vmem:[%s142 + $0x60] sm:$0xff] %vm278, %v274
        %292 = vst.msk [vmem:[%s142 + $0x68] sm:$0xff] %vm278, %v275
        %293 = vst.msk [vmem:[%s142 + $0x70] sm:$0xff] %vm278, %v276
        %294 = vst.msk [vmem:[%s142 + $0x78] sm:$0xff] %vm278, %v277
        %v295 = vadd.f32 %v166, %v215
        %v296 = vadd.f32 %v167, %v217
        %v297 = vadd.f32 %v168, %v219
        %v298 = vadd.f32 %v169, %v221
        %v299 = vadd.f32 %v170, %v223
        %v300 = vadd.f32 %v171, %v225
        %v301 = vadd.f32 %v172, %v227
        %v302 = vadd.f32 %v173, %v229
        %v303 = vadd.f32 %v174, %v231
        %v304 = vadd.f32 %v175, %v233
        %v305 = vadd.f32 %v176, %v235
        %v306 = vadd.f32 %v177, %v237
        %v307 = vadd.f32 %v178, %v239
        %v308 = vadd.f32 %v179, %v241
        %v309 = vadd.f32 %v180, %v243
        %v310 = vadd.f32 %v181, %v245
        %327 = vrot.lane.b32.xlu0 %v295, 2
        %v328 = vpop.permute.xlu0 %327
        %329 = vrot.lane.b32.xlu0 %v296, 2
        %v330 = vpop.permute.xlu0 %329
        %331 = vrot.lane.b32.xlu0 %v297, 2
        %v332 = vpop.permute.xlu0 %331
        %333 = vrot.lane.b32.xlu0 %v298, 2
        %v334 = vpop.permute.xlu0 %333
        %335 = vrot.lane.b32.xlu0 %v299, 2
        %v336 = vpop.permute.xlu0 %335
        %337 = vrot.lane.b32.xlu0 %v300, 2
        %v338 = vpop.permute.xlu0 %337
        %339 = vrot.lane.b32.xlu0 %v301, 2
        %v340 = vpop.permute.xlu0 %339
        %341 = vrot.lane.b32.xlu0 %v302, 2
        %v342 = vpop.permute.xlu0 %341
        %343 = vrot.lane.b32.xlu0 %v303, 2
        %v344 = vpop.permute.xlu0 %343
        %345 = vrot.lane.b32.xlu0 %v304, 2
        %v346 = vpop.permute.xlu0 %345
        %347 = vrot.lane.b32.xlu0 %v305, 2
        %v348 = vpop.permute.xlu0 %347
        %349 = vrot.lane.b32.xlu0 %v306, 2
        %v350 = vpop.permute.xlu0 %349
        %351 = vrot.lane.b32.xlu0 %v307, 2
        %v352 = vpop.permute.xlu0 %351
        %353 = vrot.lane.b32.xlu0 %v308, 2
        %v354 = vpop.permute.xlu0 %353
        %355 = vrot.lane.b32.xlu0 %v309, 2
        %v356 = vpop.permute.xlu0 %355
        %357 = vrot.lane.b32.xlu0 %v310, 2
        %v358 = vpop.permute.xlu0 %357
        %vm375 = vcmask 31760
        %376 = vst.msk [vmem:[%s142] sm:$0xff] %vm375, %v328
        %377 = vst.msk [vmem:[%s142 + $0x8] sm:$0xff] %vm375, %v330
        %378 = vst.msk [vmem:[%s142 + $0x10] sm:$0xff] %vm375, %v332
        %379 = vst.msk [vmem:[%s142 + $0x18] sm:$0xff] %vm375, %v334
        %380 = vst.msk [vmem:[%s142 + $0x20] sm:$0xff] %vm375, %v336
        %381 = vst.msk [vmem:[%s142 + $0x28] sm:$0xff] %vm375, %v338
        %382 = vst.msk [vmem:[%s142 + $0x30] sm:$0xff] %vm375, %v340
        %383 = vst.msk [vmem:[%s142 + $0x38] sm:$0xff] %vm375, %v342
        %384 = vst.msk [vmem:[%s142 + $0x40] sm:$0xff] %vm375, %v344
        %385 = vst.msk [vmem:[%s142 + $0x48] sm:$0xff] %vm375, %v346
        %386 = vst.msk [vmem:[%s142 + $0x50] sm:$0xff] %vm375, %v348
        %387 = vst.msk [vmem:[%s142 + $0x58] sm:$0xff] %vm375, %v350
        %388 = vst.msk [vmem:[%s142 + $0x60] sm:$0xff] %vm375, %v352
        %389 = vst.msk [vmem:[%s142 + $0x68] sm:$0xff] %vm375, %v354
        %390 = vst.msk [vmem:[%s142 + $0x70] sm:$0xff] %vm375, %v356
        %391 = vst.msk [vmem:[%s142 + $0x78] sm:$0xff] %vm375, %v358
        %408 = vrot.lane.b32.xlu0 %v166, 127
        %v409 = vpop.permute.xlu0 %408
        %410 = vrot.lane.b32.xlu0 %v167, 127
        %v411 = vpop.permute.xlu0 %410
        %412 = vrot.lane.b32.xlu0 %v168, 127
        %v413 = vpop.permute.xlu0 %412
        %414 = vrot.lane.b32.xlu0 %v169, 127
        %v415 = vpop.permute.xlu0 %414
        %416 = vrot.lane.b32.xlu0 %v170, 127
        %v417 = vpop.permute.xlu0 %416
        %418 = vrot.lane.b32.xlu0 %v171, 127
        %v419 = vpop.permute.xlu0 %418
        %420 = vrot.lane.b32.xlu0 %v172, 127
        %v421 = vpop.permute.xlu0 %420
        %422 = vrot.lane.b32.xlu0 %v173, 127
        %v423 = vpop.permute.xlu0 %422
        %424 = vrot.lane.b32.xlu0 %v174, 127
        %v425 = vpop.permute.xlu0 %424
        %426 = vrot.lane.b32.xlu0 %v175, 127
        %v427 = vpop.permute.xlu0 %426
        %428 = vrot.lane.b32.xlu0 %v176, 127
        %v429 = vpop.permute.xlu0 %428
        %430 = vrot.lane.b32.xlu0 %v177, 127
        %v431 = vpop.permute.xlu0 %430
        %432 = vrot.lane.b32.xlu0 %v178, 127
        %v433 = vpop.permute.xlu0 %432
        %434 = vrot.lane.b32.xlu0 %v179, 127
        %v435 = vpop.permute.xlu0 %434
        %436 = vrot.lane.b32.xlu0 %v180, 127
        %v437 = vpop.permute.xlu0 %436
        %438 = vrot.lane.b32.xlu0 %v181, 127
        %v439 = vpop.permute.xlu0 %438
        %v456 = vmul.f32 %v166, %v409
        %v457 = vmul.f32 %v167, %v411
        %v458 = vmul.f32 %v168, %v413
        %v459 = vmul.f32 %v169, %v415
        %v460 = vmul.f32 %v170, %v417
        %v461 = vmul.f32 %v171, %v419
        %v462 = vmul.f32 %v172, %v421
        %v463 = vmul.f32 %v173, %v423
        %v464 = vmul.f32 %v174, %v425
        %v465 = vmul.f32 %v175, %v427
        %v466 = vmul.f32 %v176, %v429
        %v467 = vmul.f32 %v177, %v431
        %v468 = vmul.f32 %v178, %v433
        %v469 = vmul.f32 %v179, %v435
        %v470 = vmul.f32 %v180, %v437
        %v471 = vmul.f32 %v181, %v439
        %vm472 = vcmask 39968
        %473 = vst.msk [vmem:[%s142] sm:$0xff] %vm472, %v456
        %474 = vst.msk [vmem:[%s142 + $0x8] sm:$0xff] %vm472, %v457
        %475 = vst.msk [vmem:[%s142 + $0x10] sm:$0xff] %vm472, %v458
        %476 = vst.msk [vmem:[%s142 + $0x18] sm:$0xff] %vm472, %v459
        %477 = vst.msk [vmem:[%s142 + $0x20] sm:$0xff] %vm472, %v460
        %478 = vst.msk [vmem:[%s142 + $0x28] sm:$0xff] %vm472, %v461
        %479 = vst.msk [vmem:[%s142 + $0x30] sm:$0xff] %vm472, %v462
        %480 = vst.msk [vmem:[%s142 + $0x38] sm:$0xff] %vm472, %v463
        %481 = vst.msk [vmem:[%s142 + $0x40] sm:$0xff] %vm472, %v464
        %482 = vst.msk [vmem:[%s142 + $0x48] sm:$0xff] %vm472, %v465
        %483 = vst.msk [vmem:[%s142 + $0x50] sm:$0xff] %vm472, %v466
        %484 = vst.msk [vmem:[%s142 + $0x58] sm:$0xff] %vm472, %v467
        %485 = vst.msk [vmem:[%s142 + $0x60] sm:$0xff] %vm472, %v468
        %486 = vst.msk [vmem:[%s142 + $0x68] sm:$0xff] %vm472, %v469
        %487 = vst.msk [vmem:[%s142 + $0x70] sm:$0xff] %vm472, %v470
        %488 = vst.msk [vmem:[%s142 + $0x78] sm:$0xff] %vm472, %v471
        %s489 = sand.u32 %s62, 1
        %s490 = sand.u32 %s62, 1
        %s491 = smul.addr %s490, 128
        %s492 = scalar_lea.vmem [#allocation2], %s491
        // Predicated region
        $region25: #{tpu_custom_call.1} parent=23 // pred_check
          %p493 = pneg %p72
        $region26: #{tpu_custom_call.1} parent=23 // pred_check_branch
          %495 = sbr.rel (%p493) target = $region28
        $region27: #{tpu_custom_call.1} parent=23 // pred_region
          %s496 = smul.u32 16, %s17
          %s497 = ssub.s32 38, %s496
          %p498 = scmp.lt.s32.totalorder %s497, 16
          %s499 = scalar_select %p498, %s497, 16
          %s500 = smul.u32 128, %s499
          %p501 = scmp.ne.s32.totalorder 0, %s500
          %s502 = smul.addr %s16, 38
          %s503 = sadd.s32 %s496, %s502
          %s504 = smul.addr %s503, 8
          %s505 = scalar_lea.vmem %s1, %s504
          // Predicated region
          $region29: #{tpu_custom_call.1} parent=27 // pred_check
            %p506 = pneg %p501
          $region30: #{tpu_custom_call.1} parent=27 // pred_check_branch
            %508 = sbr.rel (%p506) target = $region32
          $region31: #{tpu_custom_call.1} parent=27 // pred_region
            // Predicated region
            $region33: #{tpu_custom_call.1} parent=31 // pred_check
              _
            $region34: #{tpu_custom_call.1} parent=31 // pred_check_branch
              %510 = sbr.rel (0) target = $region36
            $region35: #{tpu_custom_call.1} parent=31 // pred_region
              // Predicated region
              $region55: #{tpu_custom_call.1} parent=35 // pred_check
                _
              $region56: #{tpu_custom_call.1} parent=35 // pred_check_branch
                %590 = sbr.rel (0) target = $region58
              $region57: #{tpu_custom_call.1} parent=35 // pred_region
                %s591 = sshrl.u32 %s499, 4
                // While loop
                $region59: #{tpu_custom_call.1} parent=57 // loop_pre_header
                  _
                $region60: #{tpu_custom_call.1} parent=57 // loop_header
                  %s593 = sphi 0, %s595
                  %p594 = scmp.ge.s32.totalorder %s593, %s591
                  %s598 = sphi 0, %s635
                  %s599 = sphi %s492, %s638
                  %s600 = sphi %s505, %s639
                $region61: #{tpu_custom_call.1} parent=57 // loop_header_branch
                  %597 = sbr.rel (%p594) target = $region65
                $region62: #{tpu_custom_call.1} parent=57 // loop_body
                  %v601 = vld [vmem:[%s599] sm:$0xff]
                  %602 = vst [vmem:[%s600] sm:$0xff] %v601
                  %v603 = vld [vmem:[%s599 + $0x8] sm:$0xff]
                  %604 = vst [vmem:[%s600 + $0x8] sm:$0xff] %v603
                  %v605 = vld [vmem:[%s599 + $0x10] sm:$0xff]
                  %606 = vst [vmem:[%s600 + $0x10] sm:$0xff] %v605
                  %v607 = vld [vmem:[%s599 + $0x18] sm:$0xff]
                  %608 = vst [vmem:[%s600 + $0x18] sm:$0xff] %v607
                  %v609 = vld [vmem:[%s599 + $0x20] sm:$0xff]
                  %610 = vst [vmem:[%s600 + $0x20] sm:$0xff] %v609
                  %v611 = vld [vmem:[%s599 + $0x28] sm:$0xff]
                  %612 = vst [vmem:[%s600 + $0x28] sm:$0xff] %v611
                  %v613 = vld [vmem:[%s599 + $0x30] sm:$0xff]
                  %614 = vst [vmem:[%s600 + $0x30] sm:$0xff] %v613
                  %v615 = vld [vmem:[%s599 + $0x38] sm:$0xff]
                  %616 = vst [vmem:[%s600 + $0x38] sm:$0xff] %v615
                  %v617 = vld [vmem:[%s599 + $0x40] sm:$0xff]
                  %618 = vst [vmem:[%s600 + $0x40] sm:$0xff] %v617
                  %v619 = vld [vmem:[%s599 + $0x48] sm:$0xff]
                  %620 = vst [vmem:[%s600 + $0x48] sm:$0xff] %v619
                  %v621 = vld [vmem:[%s599 + $0x50] sm:$0xff]
                  %622 = vst [vmem:[%s600 + $0x50] sm:$0xff] %v621
                  %v623 = vld [vmem:[%s599 + $0x58] sm:$0xff]
                  %624 = vst [vmem:[%s600 + $0x58] sm:$0xff] %v623
                  %v625 = vld [vmem:[%s599 + $0x60] sm:$0xff]
                  %626 = vst [vmem:[%s600 + $0x60] sm:$0xff] %v625
                  %v627 = vld [vmem:[%s599 + $0x68] sm:$0xff]
                  %628 = vst [vmem:[%s600 + $0x68] sm:$0xff] %v627
                  %v629 = vld [vmem:[%s599 + $0x70] sm:$0xff]
                  %630 = vst [vmem:[%s600 + $0x70] sm:$0xff] %v629
                  %v631 = vld [vmem:[%s599 + $0x78] sm:$0xff]
                  %632 = vst [vmem:[%s600 + $0x78] sm:$0xff] %v631
                  %s633 = sadd.s32 1, %s598
                  %p634 = scmp.ge.s32.totalorder %s633, %s591
                  %s635 = scalar_select %p634, 0, %s633
                  %s636 = smul.u32 %s635, 128
                  %s637 = smul.u32 %s635, 128
                  %s638 = scalar_lea.vmem %s492, %s636 [#allocation2]
                  %s639 = scalar_lea.vmem %s505, %s637
                $region63: #{tpu_custom_call.1} parent=57 // loop_footer
                  %s595 = sadd.s32 %s593, 1
                $region64: #{tpu_custom_call.1} parent=57 // loop_footer_branch
                  %592 = sbr.rel target = $region60
                $region65: #{tpu_custom_call.1} parent=57 // loop_exit
                  _
                %s640 = sshrl.u32 %s499, 4
                %s641 = sand.u32 %s499, 15
                %s642 = smul.u32 %s640, 16
                %s643 = smul.u32 8, %s642
                %s644 = scalar_lea.vmem %s492, %s643 [#allocation2]
                %s645 = smul.u32 8, %s642
                %s646 = scalar_lea.vmem %s505, %s645
                // While loop
                $region66: #{tpu_custom_call.1} parent=57 // loop_pre_header
                  _
                $region67: #{tpu_custom_call.1} parent=57 // loop_header
                  %s648 = sphi 0, %s650
                  %p649 = scmp.ge.s32.totalorder %s648, %s641
                  %s653 = sphi 0, %s660
                  %s654 = sphi %s644, %s663
                  %s655 = sphi %s646, %s664
                $region68: #{tpu_custom_call.1} parent=57 // loop_header_branch
                  %652 = sbr.rel (%p649) target = $region72
                $region69: #{tpu_custom_call.1} parent=57 // loop_body
                  %v656 = vld [vmem:[%s654] sm:$0xff]
                  %657 = vst [vmem:[%s655] sm:$0xff] %v656
                  %s658 = sadd.s32 1, %s653
                  %p659 = scmp.ge.s32.totalorder %s658, %s641
                  %s660 = scalar_select %p659, 0, %s658
                  %s661 = smul.u32 %s660, 8
                  %s662 = smul.u32 %s660, 8
                  %s663 = scalar_lea.vmem %s644, %s661 [#allocation2]
                  %s664 = scalar_lea.vmem %s646, %s662
                $region70: #{tpu_custom_call.1} parent=57 // loop_footer
                  %s650 = sadd.s32 %s648, 1
                $region71: #{tpu_custom_call.1} parent=57 // loop_footer_branch
                  %647 = sbr.rel target = $region67
                $region72: #{tpu_custom_call.1} parent=57 // loop_exit
                  _
              $region58: #{tpu_custom_call.1} parent=35 // pred_fallthru
                _
              // Predicated region
              $region73: #{tpu_custom_call.1} parent=35 // pred_check
                _
              $region74: #{tpu_custom_call.1} parent=35 // pred_check_branch
                %666 = sbr.rel target = $region76
              $region75: #{tpu_custom_call.1} parent=35 // pred_region
                _
              $region76: #{tpu_custom_call.1} parent=35 // pred_fallthru
                _
            $region36: #{tpu_custom_call.1} parent=31 // pred_fallthru
              _
            // Predicated region
            $region37: #{tpu_custom_call.1} parent=31 // pred_check
              _
            $region38: #{tpu_custom_call.1} parent=31 // pred_check_branch
              %512 = sbr.rel target = $region40
            $region39: #{tpu_custom_call.1} parent=31 // pred_region
              %s514 = ssub.s32 256, 1
              %s515 = sshrl.u32 %s499, 4
              // While loop
              $region41: #{tpu_custom_call.1} parent=39 // loop_pre_header
                _
              $region42: #{tpu_custom_call.1} parent=39 // loop_header
                %s517 = sphi 0, %s519
                %p518 = scmp.ge.s32.totalorder %s517, %s515
                %s522 = sphi 0, %s559
                %s523 = sphi %s492, %s562
                %s524 = sphi %s505, %s563
              $region43: #{tpu_custom_call.1} parent=39 // loop_header_branch
                %521 = sbr.rel (%p518) target = $region47
              $region44: #{tpu_custom_call.1} parent=39 // loop_body
                %v525 = vld [vmem:[%s523] sm:%s514]
                %526 = vst [vmem:[%s524] sm:%s514] %v525
                %v527 = vld [vmem:[%s523 + $0x8] sm:%s514]
                %528 = vst [vmem:[%s524 + $0x8] sm:%s514] %v527
                %v529 = vld [vmem:[%s523 + $0x10] sm:%s514]
                %530 = vst [vmem:[%s524 + $0x10] sm:%s514] %v529
                %v531 = vld [vmem:[%s523 + $0x18] sm:%s514]
                %532 = vst [vmem:[%s524 + $0x18] sm:%s514] %v531
                %v533 = vld [vmem:[%s523 + $0x20] sm:%s514]
                %534 = vst [vmem:[%s524 + $0x20] sm:%s514] %v533
                %v535 = vld [vmem:[%s523 + $0x28] sm:%s514]
                %536 = vst [vmem:[%s524 + $0x28] sm:%s514] %v535
                %v537 = vld [vmem:[%s523 + $0x30] sm:%s514]
                %538 = vst [vmem:[%s524 + $0x30] sm:%s514] %v537
                %v539 = vld [vmem:[%s523 + $0x38] sm:%s514]
                %540 = vst [vmem:[%s524 + $0x38] sm:%s514] %v539
                %v541 = vld [vmem:[%s523 + $0x40] sm:%s514]
                %542 = vst [vmem:[%s524 + $0x40] sm:%s514] %v541
                %v543 = vld [vmem:[%s523 + $0x48] sm:%s514]
                %544 = vst [vmem:[%s524 + $0x48] sm:%s514] %v543
                %v545 = vld [vmem:[%s523 + $0x50] sm:%s514]
                %546 = vst [vmem:[%s524 + $0x50] sm:%s514] %v545
                %v547 = vld [vmem:[%s523 + $0x58] sm:%s514]
                %548 = vst [vmem:[%s524 + $0x58] sm:%s514] %v547
                %v549 = vld [vmem:[%s523 + $0x60] sm:%s514]
                %550 = vst [vmem:[%s524 + $0x60] sm:%s514] %v549
                %v551 = vld [vmem:[%s523 + $0x68] sm:%s514]
                %552 = vst [vmem:[%s524 + $0x68] sm:%s514] %v551
                %v553 = vld [vmem:[%s523 + $0x70] sm:%s514]
                %554 = vst [vmem:[%s524 + $0x70] sm:%s514] %v553
                %v555 = vld [vmem:[%s523 + $0x78] sm:%s514]
                %556 = vst [vmem:[%s524 + $0x78] sm:%s514] %v555
                %s557 = sadd.s32 1, %s522
                %p558 = scmp.ge.s32.totalorder %s557, %s515
                %s559 = scalar_select %p558, 0, %s557
                %s560 = smul.u32 %s559, 128
                %s561 = smul.u32 %s559, 128
                %s562 = scalar_lea.vmem %s492, %s560 [#allocation2]
                %s563 = scalar_lea.vmem %s505, %s561
              $region45: #{tpu_custom_call.1} parent=39 // loop_footer
                %s519 = sadd.s32 %s517, 1
              $region46: #{tpu_custom_call.1} parent=39 // loop_footer_branch
                %516 = sbr.rel target = $region42
              $region47: #{tpu_custom_call.1} parent=39 // loop_exit
                _
              %s564 = sshrl.u32 %s499, 4
              %s565 = sand.u32 %s499, 15
              %s566 = smul.u32 %s564, 16
              %s567 = smul.u32 8, %s566
              %s568 = scalar_lea.vmem %s492, %s567 [#allocation2]
              %s569 = smul.u32 8, %s566
              %s570 = scalar_lea.vmem %s505, %s569
              // While loop
              $region48: #{tpu_custom_call.1} parent=39 // loop_pre_header
                _
              $region49: #{tpu_custom_call.1} parent=39 // loop_header
                %s572 = sphi 0, %s574
                %p573 = scmp.ge.s32.totalorder %s572, %s565
                %s577 = sphi 0, %s584
                %s578 = sphi %s568, %s587
                %s579 = sphi %s570, %s588
              $region50: #{tpu_custom_call.1} parent=39 // loop_header_branch
                %576 = sbr.rel (%p573) target = $region54
              $region51: #{tpu_custom_call.1} parent=39 // loop_body
                %v580 = vld [vmem:[%s578] sm:%s514]
                %581 = vst [vmem:[%s579] sm:%s514] %v580
                %s582 = sadd.s32 1, %s577
                %p583 = scmp.ge.s32.totalorder %s582, %s565
                %s584 = scalar_select %p583, 0, %s582
                %s585 = smul.u32 %s584, 8
                %s586 = smul.u32 %s584, 8
                %s587 = scalar_lea.vmem %s568, %s585 [#allocation2]
                %s588 = scalar_lea.vmem %s570, %s586
              $region52: #{tpu_custom_call.1} parent=39 // loop_footer
                %s574 = sadd.s32 %s572, 1
              $region53: #{tpu_custom_call.1} parent=39 // loop_footer_branch
                %571 = sbr.rel target = $region49
              $region54: #{tpu_custom_call.1} parent=39 // loop_exit
                _
            $region40: #{tpu_custom_call.1} parent=31 // pred_fallthru
              _
          $region32: #{tpu_custom_call.1} parent=27 // pred_fallthru
            _
          %667 = vnop
        $region28: #{tpu_custom_call.1} parent=23 // pred_fallthru
          _
      $region24: #{tpu_custom_call.1} parent=5 // pred_fallthru
        _
      %p668 = scmp.le.s32.totalorder 2, %s7
      // Predicated region
      $region77: #{tpu_custom_call.1} parent=5 // pred_check
        %p669 = pneg %p668
      $region78: #{tpu_custom_call.1} parent=5 // pred_check_branch
        %671 = sbr.rel (%p669) target = $region80
      $region79: #{tpu_custom_call.1} parent=5 // pred_region
        %s672 = ssub.s32 %s7, 2
        // Predicated region
        $region81: #{tpu_custom_call.1} parent=79 // pred_check
          %p673 = pneg %p78
        $region82: #{tpu_custom_call.1} parent=79 // pred_check_branch
          %675 = sbr.rel (%p673) target = $region84
        $region83: #{tpu_custom_call.1} parent=79 // pred_region
          %s676 = sand.u32 %s63, 1
          %s677 = sand.u32 %s63, 1
          %s678 = smul.addr %s677, 128
          %s679 = scalar_lea.vmem [#allocation2], %s678
        $region84: #{tpu_custom_call.1} parent=79 // pred_fallthru
          _
      $region80: #{tpu_custom_call.1} parent=5 // pred_fallthru
        _
    $region6: #{tpu_custom_call.1} parent=1 // loop_footer
      %s11 = sadd.s32 1, %s7
    $region7: #{tpu_custom_call.1} parent=1 // loop_footer_branch
      %6 = sbr.rel target = $region3
    $region8: #{tpu_custom_call.1} parent=1 // loop_exit
      _

</llo_original>
